<compile_context>
chip_gen: v5e
topology: v5e:2x2
jax: 0.10.0
libtpu: 0.0.40
codegen_flags: <defaults>
</compile_context>

<pallas_src>
import functools

import jax
import jax.numpy as jnp
from jax.experimental import pallas as pl
from jax.experimental.pallas import tpu as pltpu


LANE = 128            # last dims padded to a multiple of the TPU lane width
DEFAULT_TILE_B = 256  # batch rows per grid step (sweep 256-512 at real batch sizes)


def _round_up(n: int, m: int) -> int:
    return ((n + m - 1) // m) * m


def _vmem_cap_bytes() -> int:
    """Generation-aware scoped-VMEM cap: ~80% of physical per-core VMEM."""
    try:
        phys = int(pltpu.get_tpu_info().vmem_capacity_bytes)
    except Exception:
        phys = 64 * 1024 * 1024  # conservative fallback (v7x per-TC size)
    return int(0.8 * phys)       # ~51 MiB on v7x, ~102 MiB on v5e/v6e


def _const_spec(shape):
    """Weights/biases: constant block index => DMA'd once; Buffered(1) => single VMEM buffer."""
    try:
        return pl.BlockSpec(shape, lambda i: (0, 0), pipeline_mode=pl.Buffered(1))
    except TypeError:  # older jax without the pipeline_mode kwarg
        return pl.BlockSpec(shape, lambda i: (0, 0))


def qnet_kernel(x_ref, w1_ref, b1_ref, w2_ref, b2_ref, w3_ref, b3_ref, out_ref):
    # x tile arrives in its original (f32) dtype; cast to the matmul dtype here so the
    # wrapper never materializes a casted copy of x in HBM.
    x = x_ref[...].astype(w1_ref.dtype)
    h = jnp.dot(x, w1_ref[...], preferred_element_type=jnp.float32)
    h = jnp.maximum(h + b1_ref[...], 0.0)
    h = jnp.dot(h.astype(w2_ref.dtype), w2_ref[...], preferred_element_type=jnp.float32)
    h = jnp.maximum(h + b2_ref[...], 0.0)
    o = jnp.dot(h.astype(w3_ref.dtype), w3_ref[...], preferred_element_type=jnp.float32)
    out_ref[...] = (o + b3_ref[...]).astype(out_ref.dtype)


def pad_qnetwork_params(params, mm_dtype=jnp.bfloat16):
    """Pad feature dims to LANE multiples and cast matmul operands ONCE (outside the
    per-call forward). Padded rows/cols are zero, so semantics are preserved."""
    w1, b1, w2, b2, w3, b3 = (params[k] for k in ("w1", "b1", "w2", "b2", "w3", "b3"))
    din, hid = w1.shape
    dout = w3.shape[1]
    din_p, hid_p, dout_p = (_round_up(d, LANE) for d in (din, hid, dout))

    def pad_w(w, rows, cols):
        r, c = w.shape
        return jnp.zeros((rows, cols), mm_dtype).at[:r, :c].set(w.astype(mm_dtype))

    def pad_b(b, cols):
        b = b.reshape(1, -1)
        return jnp.zeros((1, cols), jnp.float32).at[:, :b.shape[1]].set(b.astype(jnp.float32))

    return {
        "w1": pad_w(w1, din_p, hid_p), "b1": pad_b(b1, hid_p),
        "w2": pad_w(w2, hid_p, hid_p), "b2": pad_b(b2, hid_p),
        "w3": pad_w(w3, hid_p, dout_p), "b3": pad_b(b3, dout_p),
    }


@functools.partial(jax.jit, static_argnames=("output_dim", "tile_b", "out_dtype"))
def qnetwork_forward(x, padded_params, output_dim, *, tile_b=DEFAULT_TILE_B,
                     out_dtype=jnp.float32):
    """x: (B, input_dim). padded_params: output of pad_qnetwork_params. Returns (B, output_dim)."""
    w1, b1, w2, b2, w3, b3 = (padded_params[k] for k in ("w1", "b1", "w2", "b2", "w3", "b3"))
    B, din = x.shape
    din_p, hid_p = w1.shape
    dout_p = w3.shape[1]

    # Adaptive batch tile: big for throughput, shrunk (to a sublane multiple of 8)
    # for tiny batches so we don't pad B=8 up to 256 rows of wasted MXU work.
    tile_b = int(min(tile_b, _round_up(max(B, 1), 8)))
    b_p = _round_up(max(B, 1), tile_b)

    # Only materialize a padded copy of x when actually needed (batch tail / non-lane-dense din).
    if b_p == B and din_p == din:
        x_in = x
    else:
        x_in = jnp.zeros((b_p, din_p), x.dtype).at[:B, :din].set(x)

    grid = (b_p // tile_b,)

    # Advisory cost estimate so XLA can overlap neighbors with this custom call.
    flops = 2 * b_p * (din_p * hid_p + hid_p * hid_p + hid_p * dout_p)
    weight_bytes = sum(int(a.size) * a.dtype.itemsize for a in (w1, b1, w2, b2, w3, b3))
    out_itemsize = jnp.dtype(out_dtype).itemsize
    bytes_accessed = (int(x_in.size) * x_in.dtype.itemsize
                      + weight_bytes
                      + b_p * dout_p * out_itemsize)

    # VMEM budget: resident weights (single-buffered via Buffered(1)) + double-buffered
    # x/out tiles + the intermediate activation h (f32 + bf16 copy) + in-kernel bf16 x copy.
    x_tile_bytes = tile_b * din_p * x_in.dtype.itemsize
    out_tile_bytes = tile_b * dout_p * out_itemsize
    act_bytes = tile_b * hid_p * 6 + tile_b * din_p * 2 + tile_b * dout_p * 4
    needed = weight_bytes + 2 * x_tile_bytes + 2 * out_tile_bytes + act_bytes
    vmem_limit = int(min(_vmem_cap_bytes(), max(32 * 1024 * 1024, int(1.25 * needed))))

    out_p = pl.pallas_call(
        qnet_kernel,
        out_shape=jax.ShapeDtypeStruct((b_p, dout_p), out_dtype),
        grid_spec=pl.GridSpec(
            grid=grid,
            in_specs=[
                pl.BlockSpec((tile_b, din_p), lambda i: (i, 0)),   # streamed batch tile
                _const_spec((din_p, hid_p)), _const_spec((1, hid_p)),
                _const_spec((hid_p, hid_p)), _const_spec((1, hid_p)),
                _const_spec((hid_p, dout_p)), _const_spec((1, dout_p)),
            ],
            out_specs=pl.BlockSpec((tile_b, dout_p), lambda i: (i, 0)),
        ),
        compiler_params=pltpu.CompilerParams(
            dimension_semantics=("parallel",),   # v7x: shard batch tiles across both TCs
            vmem_limit_bytes=vmem_limit,
        ),
        cost_estimate=pl.CostEstimate(
            flops=flops, transcendentals=0, bytes_accessed=bytes_accessed),
    )(x_in, w1, b1, w2, b2, w3, b3)

    return out_p[:B, :output_dim]


def init_qnetwork_params(key, input_dim, hidden_dim, output_dim, dtype=jnp.float32):
    """Deterministic init mimicking nn.Linear's U(-1/sqrt(fan_in), 1/sqrt(fan_in))."""
    ks = jax.random.split(key, 6)

    def linear(kw, kb, fan_in, fan_out):
        bound = 1.0 / jnp.sqrt(jnp.asarray(fan_in, dtype))
        w = jax.random.uniform(kw, (fan_in, fan_out), dtype, -bound, bound)
        b = jax.random.uniform(kb, (1, fan_out), dtype, -bound, bound)
        return w, b

    w1, b1 = linear(ks[0], ks[1], input_dim, hidden_dim)
    w2, b2 = linear(ks[2], ks[3], hidden_dim, hidden_dim)
    w3, b3 = linear(ks[4], ks[5], hidden_dim, output_dim)
    return {"w1": w1, "b1": b1, "w2": w2, "b2": b2, "w3": w3, "b3": b3}


def qnetwork_ref(x, p, mm_dtype=jnp.float32):
    """Pure-JAX reference; mm_dtype lets us check against the same bf16-matmul precision."""
    def dense(a, w, b):
        return jnp.dot(a.astype(mm_dtype), w.astype(mm_dtype),
                       preferred_element_type=jnp.float32) + b.astype(jnp.float32)

    h = jnp.maximum(dense(x, p["w1"], p["b1"]), 0.0)
    h = jnp.maximum(dense(h, p["w2"], p["b2"]), 0.0)
    return dense(h, p["w3"], p["b3"])


if __name__ == "__main__":
    key = jax.random.PRNGKey(0)
    k_x, k_p, k_x2, k_p2 = jax.random.split(key, 4)

    # --- small / toy shapes (adaptive tile path: tile_b shrinks to 8) ---
    batch, input_dim, hidden_dim, output_dim = 8, 16, 32, 4
    x = jax.random.normal(k_x, (batch, input_dim), jnp.float32)
    params = init_qnetwork_params(k_p, input_dim, hidden_dim, output_dim)
    padded = pad_qnetwork_params(params)           # done once, outside the forward

    out = qnetwork_forward(x, padded, output_dim)
    out = jax.block_until_ready(out)
    assert out.shape == (batch, output_dim)

    ref_bf16 = qnetwork_ref(x, params, mm_dtype=jnp.bfloat16)
    assert jnp.allclose(out, ref_bf16, atol=2e-3, rtol=2e-3), "small: mismatch vs bf16 reference"
    ref_f32 = qnetwork_ref(x, params, mm_dtype=jnp.float32)
    assert jnp.allclose(out, ref_f32, atol=1e-1, rtol=1e-1), "small: mismatch vs f32 reference"

    # --- larger batch (exercises grid > 1 streaming of x/out tiles) ---
    batch2, input_dim2, hidden_dim2, output_dim2 = 512, 16, 256, 4
    x2 = jax.random.normal(k_x2, (batch2, input_dim2), jnp.float32)
    params2 = init_qnetwork_params(k_p2, input_dim2, hidden_dim2, output_dim2)
    padded2 = pad_qnetwork_params(params2)

    out2 = jax.block_until_ready(qnetwork_forward(x2, padded2, output_dim2))
    assert out2.shape == (batch2, output_dim2)
    ref2 = qnetwork_ref(x2, params2, mm_dtype=jnp.bfloat16)
    assert jnp.allclose(out2, ref2, atol=1e-2, rtol=1e-2), "large: mismatch vs bf16 reference"

    print("KERNEL_OK")
</pallas_src>

<mosaic_0001>
module attributes {stable_mosaic.version = 11 : i64} {
  func.func @qnet_kernel(%arg0: i32, %arg1: memref<8x128xf32, #tpu.memory_space<vmem>>, %arg2: memref<128x128xbf16, #tpu.memory_space<vmem>>, %arg3: memref<1x128xf32, #tpu.memory_space<vmem>>, %arg4: memref<128x128xbf16, #tpu.memory_space<vmem>>, %arg5: memref<1x128xf32, #tpu.memory_space<vmem>>, %arg6: memref<128x128xbf16, #tpu.memory_space<vmem>>, %arg7: memref<1x128xf32, #tpu.memory_space<vmem>>, %arg8: memref<8x128xf32, #tpu.memory_space<vmem>>) attributes {dimension_semantics = [#tpu.dimension_semantics<parallel>], iteration_bounds = array<i64: 1>, scalar_prefetch = 0 : i64, scratch_operands = 0 : i64, tpu.core_type = #tpu.core_type<tc>, window_params = [{transform_indices = @transform_0, window_bounds = array<i64: 8, 128>}, {pipeline_mode = #tpu.pipeline_mode<synchronous>, transform_indices = @transform_1, window_bounds = array<i64: 128, 128>}, {pipeline_mode = #tpu.pipeline_mode<synchronous>, transform_indices = @transform_2, window_bounds = array<i64: 1, 128>}, {pipeline_mode = #tpu.pipeline_mode<synchronous>, transform_indices = @transform_3, window_bounds = array<i64: 128, 128>}, {pipeline_mode = #tpu.pipeline_mode<synchronous>, transform_indices = @transform_4, window_bounds = array<i64: 1, 128>}, {pipeline_mode = #tpu.pipeline_mode<synchronous>, transform_indices = @transform_5, window_bounds = array<i64: 128, 128>}, {pipeline_mode = #tpu.pipeline_mode<synchronous>, transform_indices = @transform_6, window_bounds = array<i64: 1, 128>}, {transform_indices = @transform_7, window_bounds = array<i64: 8, 128>}]} {
    %c0 = arith.constant 0 : index
    %c0_0 = arith.constant 0 : index
    %0 = vector.load %arg1[%c0, %c0_0] : memref<8x128xf32, #tpu.memory_space<vmem>>, vector<8x128xf32>
    %1 = arith.truncf %0 : vector<8x128xf32> to vector<8x128xbf16>
    %c0_1 = arith.constant 0 : index
    %c0_2 = arith.constant 0 : index
    %2 = vector.load %arg2[%c0_1, %c0_2] : memref<128x128xbf16, #tpu.memory_space<vmem>>, vector<128x128xbf16>
    %cst = arith.constant dense<0.000000e+00> : vector<8x128xf32>
    %3 = tpu.matmul %1, %2, %cst {dimension_numbers = #tpu.dot_dimension_numbers<[1], [0], [0], [1], [0, 0, 1, 1], [], []>} : vector<8x128xbf16>, vector<128x128xbf16>, vector<8x128xf32> -> vector<8x128xf32>
    %c0_3 = arith.constant 0 : index
    %c0_4 = arith.constant 0 : index
    %4 = vector.load %arg3[%c0_3, %c0_4] : memref<1x128xf32, #tpu.memory_space<vmem>>, vector<1x128xf32>
    %5 = vector.broadcast %4 : vector<1x128xf32> to vector<8x128xf32>
    %6 = arith.addf %3, %5 : vector<8x128xf32>
    %cst_5 = arith.constant 0.000000e+00 : f32
    %7 = vector.broadcast %cst_5 : f32 to vector<8x128xf32>
    %8 = arith.maximumf %6, %7 : vector<8x128xf32>
    %9 = arith.truncf %8 : vector<8x128xf32> to vector<8x128xbf16>
    %c0_6 = arith.constant 0 : index
    %c0_7 = arith.constant 0 : index
    %10 = vector.load %arg4[%c0_6, %c0_7] : memref<128x128xbf16, #tpu.memory_space<vmem>>, vector<128x128xbf16>
    %cst_8 = arith.constant dense<0.000000e+00> : vector<8x128xf32>
    %11 = tpu.matmul %9, %10, %cst_8 {dimension_numbers = #tpu.dot_dimension_numbers<[1], [0], [0], [1], [0, 0, 1, 1], [], []>} : vector<8x128xbf16>, vector<128x128xbf16>, vector<8x128xf32> -> vector<8x128xf32>
    %c0_9 = arith.constant 0 : index
    %c0_10 = arith.constant 0 : index
    %12 = vector.load %arg5[%c0_9, %c0_10] : memref<1x128xf32, #tpu.memory_space<vmem>>, vector<1x128xf32>
    %13 = vector.broadcast %12 : vector<1x128xf32> to vector<8x128xf32>
    %14 = arith.addf %11, %13 : vector<8x128xf32>
    %cst_11 = arith.constant 0.000000e+00 : f32
    %15 = vector.broadcast %cst_11 : f32 to vector<8x128xf32>
    %16 = arith.maximumf %14, %15 : vector<8x128xf32>
    %17 = arith.truncf %16 : vector<8x128xf32> to vector<8x128xbf16>
    %c0_12 = arith.constant 0 : index
    %c0_13 = arith.constant 0 : index
    %18 = vector.load %arg6[%c0_12, %c0_13] : memref<128x128xbf16, #tpu.memory_space<vmem>>, vector<128x128xbf16>
    %cst_14 = arith.constant dense<0.000000e+00> : vector<8x128xf32>
    %19 = tpu.matmul %17, %18, %cst_14 {dimension_numbers = #tpu.dot_dimension_numbers<[1], [0], [0], [1], [0, 0, 1, 1], [], []>} : vector<8x128xbf16>, vector<128x128xbf16>, vector<8x128xf32> -> vector<8x128xf32>
    %c0_15 = arith.constant 0 : index
    %c0_16 = arith.constant 0 : index
    %20 = vector.load %arg7[%c0_15, %c0_16] : memref<1x128xf32, #tpu.memory_space<vmem>>, vector<1x128xf32>
    %21 = vector.broadcast %20 : vector<1x128xf32> to vector<8x128xf32>
    %22 = arith.addf %19, %21 : vector<8x128xf32>
    %c0_17 = arith.constant 0 : index
    %c0_18 = arith.constant 0 : index
    %23 = vector.load %arg8[%c0_17, %c0_18] : memref<8x128xf32, #tpu.memory_space<vmem>>, vector<8x128xf32>
    tpu.vector_store %arg8[%c0_17, %c0_18], %22 {strides = array<i32>} : memref<8x128xf32, #tpu.memory_space<vmem>>, vector<8x128xf32>,
    return
  }
  func.func @transform_0(%arg0: i32) -> (i32, i32) {
    %c0_i32 = arith.constant 0 : i32
    %c0_i32_0 = arith.constant 0 : i32
    return %arg0, %c0_i32 : i32, i32
  }
  func.func @transform_1(%arg0: i32) -> (i32, i32) {
    %c0_i32 = arith.constant 0 : i32
    %c0_i32_0 = arith.constant 0 : i32
    %c0_i32_1 = arith.constant 0 : i32
    return %c0_i32, %c0_i32_0 : i32, i32
  }
  func.func @transform_2(%arg0: i32) -> (i32, i32) {
    %c0_i32 = arith.constant 0 : i32
    %c0_i32_0 = arith.constant 0 : i32
    %c0_i32_1 = arith.constant 0 : i32
    return %c0_i32, %c0_i32_0 : i32, i32
  }
  func.func @transform_3(%arg0: i32) -> (i32, i32) {
    %c0_i32 = arith.constant 0 : i32
    %c0_i32_0 = arith.constant 0 : i32
    %c0_i32_1 = arith.constant 0 : i32
    return %c0_i32, %c0_i32_0 : i32, i32
  }
  func.func @transform_4(%arg0: i32) -> (i32, i32) {
    %c0_i32 = arith.constant 0 : i32
    %c0_i32_0 = arith.constant 0 : i32
    %c0_i32_1 = arith.constant 0 : i32
    return %c0_i32, %c0_i32_0 : i32, i32
  }
  func.func @transform_5(%arg0: i32) -> (i32, i32) {
    %c0_i32 = arith.constant 0 : i32
    %c0_i32_0 = arith.constant 0 : i32
    %c0_i32_1 = arith.constant 0 : i32
    return %c0_i32, %c0_i32_0 : i32, i32
  }
  func.func @transform_6(%arg0: i32) -> (i32, i32) {
    %c0_i32 = arith.constant 0 : i32
    %c0_i32_0 = arith.constant 0 : i32
    %c0_i32_1 = arith.constant 0 : i32
    return %c0_i32, %c0_i32_0 : i32, i32
  }
  func.func @transform_7(%arg0: i32) -> (i32, i32) {
    %c0_i32 = arith.constant 0 : i32
    %c0_i32_0 = arith.constant 0 : i32
    return %arg0, %c0_i32 : i32, i32
  }
}

</mosaic_0001>

<llo_original>
// kernel: qnetwork_forward.1
$region0: #{qnetwork_forward.1}
  #allocation0 [shape = 'u32[]', space=smem, size = 0x4, offset = 0x4, fixed_abs, tag = 'smem constant byte address 0x4 - core index']
  #allocation1 [shape = 'u32[72,128]{1,0:T(1,128)}', space=vmem, size = 0x9000, scoped, tag = 'internal scratch']
  %s0 = inlined_call_operand.vmem [shape: f32[8,128], index: 0, kind: input, shape index: {}]
  %s1 = inlined_call_operand.hbm [shape: bf16[128,128], index: 1, kind: input, shape index: {}]
  %s2 = inlined_call_operand.vmem [shape: f32[1,128], index: 2, kind: input, shape index: {}]
  %s3 = inlined_call_operand.hbm [shape: bf16[128,128], index: 3, kind: input, shape index: {}]
  %s4 = inlined_call_operand.vmem [shape: f32[1,128], index: 4, kind: input, shape index: {}]
  %s5 = inlined_call_operand.hbm [shape: bf16[128,128], index: 5, kind: input, shape index: {}]
  %s6 = inlined_call_operand.vmem [shape: f32[1,128], index: 6, kind: input, shape index: {}]
  %s7 = inlined_call_operand.vmem [shape: f32[8,128], index: 7, kind: output, shape index: {}]
  %s8 = sld [smem:[#allocation0]]
  $region50: #{qnetwork_forward.1} parent=0
    _
  %s10 = ssub.s32 1, %s8
  %s11 = scalar_select 0, %s10, %s8
  $region1: #{qnetwork_forward.1} parent=0
    #allocation2 [shape = 'u8[32768]{0}', space=vmem, size = 0x8000, scoped, tag = 'input window, operand 1, single buffered']
    #allocation3 [shape = 's32[1]{0}', space=sflag, size = 0x4, scoped, tag = 'scoped memory for qnetwork_forward.1']
    #allocation4 [shape = 'u8[32768]{0}', space=vmem, size = 0x8000, scoped, tag = 'input window, operand 3, single buffered']
    #allocation5 [shape = 's32[1]{0}', space=sflag, size = 0x4, scoped, tag = 'scoped memory for qnetwork_forward.1']
    #allocation6 [shape = 'u8[32768]{0}', space=vmem, size = 0x8000, scoped, tag = 'input window, operand 5, single buffered']
    %12 = vsyncpa [#allocation3], 0
    %13 = vsyncpa [#allocation5], 0
    // Predicated region
    $region2: #{qnetwork_forward.1} parent=1 // pred_check
      _
    $region3: #{qnetwork_forward.1} parent=1 // pred_check_branch
      %15 = sbr.rel (0) target = $region5
    $region4: #{qnetwork_forward.1} parent=1 // pred_region
      _
    $region5: #{qnetwork_forward.1} parent=1 // pred_fallthru
      _
    // Predicated region
    $region6: #{qnetwork_forward.1} parent=1 // pred_check
      _
    $region7: #{qnetwork_forward.1} parent=1 // pred_check_branch
      %17 = sbr.rel (0) target = $region9
    $region8: #{qnetwork_forward.1} parent=1 // pred_region
      %19 = vsyncadd [#allocation3], 0
      %s20 = sshll.u32 %s1, 4
      %s21 = int_to_ptr.hbm [resolvable:$true] %s20
      %s22 = sshll.u32 [#allocation2], 4
      %s23 = int_to_ptr.vmem [resolvable:$true] %s22
      %28 = dma.hbm_to_vmem [thread:$0]  %s21, 1024, %s23, [#allocation3], 64, 64, 4
    $region9: #{qnetwork_forward.1} parent=1 // pred_fallthru
      _
    // Predicated region
    $region10: #{qnetwork_forward.1} parent=1 // pred_check
      _
    $region11: #{qnetwork_forward.1} parent=1 // pred_check_branch
      %30 = sbr.rel (0) target = $region13
    $region12: #{qnetwork_forward.1} parent=1 // pred_region
      _
    $region13: #{qnetwork_forward.1} parent=1 // pred_fallthru
      _
    // Predicated region
    $region14: #{qnetwork_forward.1} parent=1 // pred_check
      _
    $region15: #{qnetwork_forward.1} parent=1 // pred_check_branch
      %32 = sbr.rel (0) target = $region17
    $region16: #{qnetwork_forward.1} parent=1 // pred_region
      %34 = vsyncadd [#allocation5], 0
      %s35 = sshll.u32 %s3, 4
      %s36 = int_to_ptr.hbm [resolvable:$true] %s35
      %s37 = sshll.u32 [#allocation4], 4
      %s38 = int_to_ptr.vmem [resolvable:$true] %s37
      %43 = dma.hbm_to_vmem [thread:$0]  %s36, 1024, %s38, [#allocation5], 64, 64, 4
    $region17: #{qnetwork_forward.1} parent=1 // pred_fallthru
      _
    // Predicated region
    $region18: #{qnetwork_forward.1} parent=1 // pred_check
      _
    $region19: #{qnetwork_forward.1} parent=1 // pred_check_branch
      %45 = sbr.rel (0) target = $region21
    $region20: #{qnetwork_forward.1} parent=1 // pred_region
      _
    $region21: #{qnetwork_forward.1} parent=1 // pred_fallthru
      _
    // Predicated region
    $region22: #{qnetwork_forward.1} parent=1 // pred_check
      _
    $region23: #{qnetwork_forward.1} parent=1 // pred_check_branch
      %47 = sbr.rel (0) target = $region25
    $region24: #{qnetwork_forward.1} parent=1 // pred_region
      %49 = vsyncadd [#allocation5], 0
      %s50 = sshll.u32 %s5, 4
      %s51 = int_to_ptr.hbm [resolvable:$true] %s50
      %s52 = sshll.u32 [#allocation6], 4
      %s53 = int_to_ptr.vmem [resolvable:$true] %s52
      %58 = dma.hbm_to_vmem [thread:$0]  %s51, 1024, %s53, [#allocation5], 64, 64, 4
    $region25: #{qnetwork_forward.1} parent=1 // pred_fallthru
      _
    // Predicated region
    $region26: #{qnetwork_forward.1} parent=1 // pred_check
      _
    $region27: #{qnetwork_forward.1} parent=1 // pred_check_branch
      %60 = sbr.rel (0) target = $region29
    $region28: #{qnetwork_forward.1} parent=1 // pred_region
      _
    $region29: #{qnetwork_forward.1} parent=1 // pred_fallthru
      _
    // Predicated region
    $region30: #{qnetwork_forward.1} parent=1 // pred_check
      _
    $region31: #{qnetwork_forward.1} parent=1 // pred_check_branch
      %62 = sbr.rel (0) target = $region33
    $region32: #{qnetwork_forward.1} parent=1 // pred_region
      %64 = dma.done [#allocation3], 1024
    $region33: #{qnetwork_forward.1} parent=1 // pred_fallthru
      _
    // Predicated region
    $region34: #{qnetwork_forward.1} parent=1 // pred_check
      _
    $region35: #{qnetwork_forward.1} parent=1 // pred_check_branch
      %66 = sbr.rel (0) target = $region37
    $region36: #{qnetwork_forward.1} parent=1 // pred_region
      %68 = dma.done [#allocation5], 1024
    $region37: #{qnetwork_forward.1} parent=1 // pred_fallthru
      _
    // Predicated region
    $region38: #{qnetwork_forward.1} parent=1 // pred_check
      _
    $region39: #{qnetwork_forward.1} parent=1 // pred_check_branch
      %70 = sbr.rel (0) target = $region41
    $region40: #{qnetwork_forward.1} parent=1 // pred_region
      %72 = dma.done [#allocation5], 1024
    $region41: #{qnetwork_forward.1} parent=1 // pred_fallthru
      _
    %v73 = vld [vmem:[%s0] sm:$0xff]
    %v74 = vpack.c.bf16 %v73, %v73
    %v75 = vld [vmem:[#allocation2] sm:$0xf]
    %v76 = vld [vmem:[#allocation2 + $0x4] sm:$0xf]
    %v77 = vld [vmem:[#allocation2 + $0x8] sm:$0xf]
    %v78 = vld [vmem:[#allocation2 + $0xc] sm:$0xf]
    %v79 = vld [vmem:[#allocation2 + $0x10] sm:$0xf]
    %v80 = vld [vmem:[#allocation2 + $0x14] sm:$0xf]
    %v81 = vld [vmem:[#allocation2 + $0x18] sm:$0xf]
    %v82 = vld [vmem:[#allocation2 + $0x1c] sm:$0xf]
    %v83 = vld [vmem:[#allocation2 + $0x20] sm:$0xf]
    %v84 = vld [vmem:[#allocation2 + $0x24] sm:$0xf]
    %v85 = vld [vmem:[#allocation2 + $0x28] sm:$0xf]
    %v86 = vld [vmem:[#allocation2 + $0x2c] sm:$0xf]
    %v87 = vld [vmem:[#allocation2 + $0x30] sm:$0xf]
    %v88 = vld [vmem:[#allocation2 + $0x34] sm:$0xf]
    %v89 = vld [vmem:[#allocation2 + $0x38] sm:$0xf]
    %v90 = vld [vmem:[#allocation2 + $0x3c] sm:$0xf]
    %v91 = vld [vmem:[%s2] sm:$0x1]
    %v93 = vperm.slane %v91, 0
    %v111 = vunpack.c.l.b16 %v75
    %v112 = vunpack.c.l.b16 %v76
    %v113 = vunpack.c.l.b16 %v77
    %v114 = vunpack.c.l.b16 %v78
    %v115 = vunpack.c.l.b16 %v79
    %v116 = vunpack.c.l.b16 %v80
    %v117 = vunpack.c.l.b16 %v81
    %v118 = vunpack.c.l.b16 %v82
    %v119 = vunpack.c.l.b16 %v83
    %v120 = vunpack.c.l.b16 %v84
    %v121 = vunpack.c.l.b16 %v85
    %v122 = vunpack.c.l.b16 %v86
    %v123 = vunpack.c.l.b16 %v87
    %v124 = vunpack.c.l.b16 %v88
    %v125 = vunpack.c.l.b16 %v89
    %v126 = vunpack.c.l.b16 %v90
    %v127 = vpack.c.b16 %v112, %v111
    %v128 = vpack.c.b16 %v114, %v113
    %v129 = vpack.c.b16 %v116, %v115
    %v130 = vpack.c.b16 %v118, %v117
    %v131 = vpack.c.b16 %v120, %v119
    %v132 = vpack.c.b16 %v122, %v121
    %v133 = vpack.c.b16 %v124, %v123
    %v134 = vpack.c.b16 %v126, %v125
    %143 = vmatpush.bf16.msra.mxu0 %v134
    %144 = vmatpush.bf16.msra.mxu0 %v133
    %145 = vmatpush.bf16.msra.mxu0 %v132
    %146 = vmatpush.bf16.msra.mxu0 %v131
    %147 = vmatpush.bf16.msra.mxu0 %v130
    %148 = vmatpush.bf16.msra.mxu0 %v129
    %149 = vmatpush.bf16.msra.mxu0 %v128
    %150 = vmatpush.bf16.msra.mxu0 %v127
    %151 = vmatmul.bf16.gmra.mxu0 %v74
    %v152 = vpop.f32.mrf.mxu0
    %v153 = vadd.f32 %v93, %v152
    %v154 = vpop.f32.mrf.mxu0
    %155 = vdwg.mxu0
    %v156 = vmax.f32 %v153, 0.0
    %v157 = vpack.c.bf16 %v156, %v156
    %v158 = vld [vmem:[#allocation4] sm:$0xf]
    %v159 = vld [vmem:[#allocation4 + $0x4] sm:$0xf]
    %v160 = vld [vmem:[#allocation4 + $0x8] sm:$0xf]
    %v161 = vld [vmem:[#allocation4 + $0xc] sm:$0xf]
    %v162 = vld [vmem:[#allocation4 + $0x10] sm:$0xf]
    %v163 = vld [vmem:[#allocation4 + $0x14] sm:$0xf]
    %v164 = vld [vmem:[#allocation4 + $0x18] sm:$0xf]
    %v165 = vld [vmem:[#allocation4 + $0x1c] sm:$0xf]
    %v166 = vld [vmem:[#allocation4 + $0x20] sm:$0xf]
    %v167 = vld [vmem:[#allocation4 + $0x24] sm:$0xf]
    %v168 = vld [vmem:[#allocation4 + $0x28] sm:$0xf]
    %v169 = vld [vmem:[#allocation4 + $0x2c] sm:$0xf]
    %v170 = vld [vmem:[#allocation4 + $0x30] sm:$0xf]
    %v171 = vld [vmem:[#allocation4 + $0x34] sm:$0xf]
    %v172 = vld [vmem:[#allocation4 + $0x38] sm:$0xf]
    %v173 = vld [vmem:[#allocation4 + $0x3c] sm:$0xf]
    %v174 = vld [vmem:[%s4] sm:$0x1]
    %v176 = vperm.slane %v174, 0
    %v194 = vunpack.c.l.b16 %v158
    %v195 = vunpack.c.l.b16 %v159
    %v196 = vunpack.c.l.b16 %v160
    %v197 = vunpack.c.l.b16 %v161
    %v198 = vunpack.c.l.b16 %v162
    %v199 = vunpack.c.l.b16 %v163
    %v200 = vunpack.c.l.b16 %v164
    %v201 = vunpack.c.l.b16 %v165
    %v202 = vunpack.c.l.b16 %v166
    %v203 = vunpack.c.l.b16 %v167
    %v204 = vunpack.c.l.b16 %v168
    %v205 = vunpack.c.l.b16 %v169
    %v206 = vunpack.c.l.b16 %v170
    %v207 = vunpack.c.l.b16 %v171
    %v208 = vunpack.c.l.b16 %v172
    %v209 = vunpack.c.l.b16 %v173
    %v210 = vpack.c.b16 %v195, %v194
    %v211 = vpack.c.b16 %v197, %v196
    %v212 = vpack.c.b16 %v199, %v198
    %v213 = vpack.c.b16 %v201, %v200
    %v214 = vpack.c.b16 %v203, %v202
    %v215 = vpack.c.b16 %v205, %v204
    %v216 = vpack.c.b16 %v207, %v206
    %v217 = vpack.c.b16 %v209, %v208
    %226 = vmatpush.bf16.msra.mxu0 %v217
    %227 = vmatpush.bf16.msra.mxu0 %v216
    %228 = vmatpush.bf16.msra.mxu0 %v215
    %229 = vmatpush.bf16.msra.mxu0 %v214
    %230 = vmatpush.bf16.msra.mxu0 %v213
    %231 = vmatpush.bf16.msra.mxu0 %v212
    %232 = vmatpush.bf16.msra.mxu0 %v211
    %233 = vmatpush.bf16.msra.mxu0 %v210
    %234 = vmatmul.bf16.gmra.mxu0 %v157
    %v235 = vpop.f32.mrf.mxu0
    %v236 = vadd.f32 %v176, %v235
    %v237 = vpop.f32.mrf.mxu0
    %238 = vdwg.mxu0
    %v239 = vmax.f32 %v236, 0.0
    %v240 = vpack.c.bf16 %v239, %v239
    %v241 = vld [vmem:[#allocation6] sm:$0xf]
    %v242 = vld [vmem:[#allocation6 + $0x4] sm:$0xf]
    %v243 = vld [vmem:[#allocation6 + $0x8] sm:$0xf]
    %v244 = vld [vmem:[#allocation6 + $0xc] sm:$0xf]
    %v245 = vld [vmem:[#allocation6 + $0x10] sm:$0xf]
    %v246 = vld [vmem:[#allocation6 + $0x14] sm:$0xf]
    %v247 = vld [vmem:[#allocation6 + $0x18] sm:$0xf]
    %v248 = vld [vmem:[#allocation6 + $0x1c] sm:$0xf]
    %v249 = vld [vmem:[#allocation6 + $0x20] sm:$0xf]
    %v250 = vld [vmem:[#allocation6 + $0x24] sm:$0xf]
    %v251 = vld [vmem:[#allocation6 + $0x28] sm:$0xf]
    %v252 = vld [vmem:[#allocation6 + $0x2c] sm:$0xf]
    %v253 = vld [vmem:[#allocation6 + $0x30] sm:$0xf]
    %v254 = vld [vmem:[#allocation6 + $0x34] sm:$0xf]
    %v255 = vld [vmem:[#allocation6 + $0x38] sm:$0xf]
    %v256 = vld [vmem:[#allocation6 + $0x3c] sm:$0xf]
    %v257 = vld [vmem:[%s6] sm:$0x1]
    %v259 = vperm.slane %v257, 0
    %v277 = vunpack.c.l.b16 %v241
    %v278 = vunpack.c.l.b16 %v242
    %v279 = vunpack.c.l.b16 %v243
    %v280 = vunpack.c.l.b16 %v244
    %v281 = vunpack.c.l.b16 %v245
    %v282 = vunpack.c.l.b16 %v246
    %v283 = vunpack.c.l.b16 %v247
    %v284 = vunpack.c.l.b16 %v248
    %v285 = vunpack.c.l.b16 %v249
    %v286 = vunpack.c.l.b16 %v250
    %v287 = vunpack.c.l.b16 %v251
    %v288 = vunpack.c.l.b16 %v252
    %v289 = vunpack.c.l.b16 %v253
    %v290 = vunpack.c.l.b16 %v254
    %v291 = vunpack.c.l.b16 %v255
    %v292 = vunpack.c.l.b16 %v256
    %v293 = vpack.c.b16 %v278, %v277
    %v294 = vpack.c.b16 %v280, %v279
    %v295 = vpack.c.b16 %v282, %v281
    %v296 = vpack.c.b16 %v284, %v283
    %v297 = vpack.c.b16 %v286, %v285
    %v298 = vpack.c.b16 %v288, %v287
    %v299 = vpack.c.b16 %v290, %v289
    %v300 = vpack.c.b16 %v292, %v291
    %309 = vmatpush.bf16.msra.mxu0 %v300
    %310 = vmatpush.bf16.msra.mxu0 %v299
    %311 = vmatpush.bf16.msra.mxu0 %v298
    %312 = vmatpush.bf16.msra.mxu0 %v297
    %313 = vmatpush.bf16.msra.mxu0 %v296
    %314 = vmatpush.bf16.msra.mxu0 %v295
    %315 = vmatpush.bf16.msra.mxu0 %v294
    %316 = vmatpush.bf16.msra.mxu0 %v293
    %317 = vmatmul.bf16.gmra.mxu0 %v240
    %v318 = vpop.f32.mrf.mxu0
    %v319 = vadd.f32 %v259, %v318
    %v320 = vpop.f32.mrf.mxu0
    %321 = vdwg.mxu0
    %322 = vst [vmem:[%s7] sm:$0xff] %v319
    // Predicated region
    $region42: #{qnetwork_forward.1} parent=1 // pred_check
      _
    $region43: #{qnetwork_forward.1} parent=1 // pred_check_branch
      %324 = sbr.rel (0) target = $region45
    $region44: #{qnetwork_forward.1} parent=1 // pred_region
      _
    $region45: #{qnetwork_forward.1} parent=1 // pred_fallthru
      _
    // Predicated region
    $region46: #{qnetwork_forward.1} parent=1 // pred_check
      _
    $region47: #{qnetwork_forward.1} parent=1 // pred_check_branch
      %326 = sbr.rel (0) target = $region49
    $region48: #{qnetwork_forward.1} parent=1 // pred_region
      _
    $region49: #{qnetwork_forward.1} parent=1 // pred_fallthru
      _
    %327 = vsyncpa [#allocation3], 1
    %328 = vsyncpa [#allocation5], 1

</llo_original>
